<compile_context>
chip_gen: v7x
topology: tpu7x:2x2x1
jax: 0.10.0
libtpu: 0.0.40
codegen_flags: <defaults>
</compile_context>

<pallas_src>
import functools

import jax
import jax.numpy as jnp
from jax.experimental import pallas as pl
from jax.experimental.pallas import tpu as pltpu


# Per-input VMEM block budget (padded-layout bytes).  Each grid step streams
# O(MiB) per input (>=85% of HBM roofline per measured tiling data) and the
# double-buffered working set stays well under every chip's scoped-VMEM default.
_BLOCK_BYTES_BUDGET = 1536 * 1024

# Leading "parallel" grid axis length: shards the reduction across the 2
# TensorCores of a v7x chip (per-core partial sums, combined in the wrapper).
# On 1-TC chips (v5e/v6e) it degenerates to a 2-iteration outer loop.
_NUM_CORE_SPLITS = 2


def _sublane_multiple(itemsize):
    return 8 if itemsize >= 4 else (16 if itemsize == 2 else 32)


def _padded_row_bytes(h, w, itemsize):
    """Tiled-layout bytes of one leading-dim row of an (rows, h, w) array."""
    sub = _sublane_multiple(itemsize)
    return (-(-h // sub) * sub) * (-(-w // 128) * 128) * itemsize


def pallas_abs_sum(*arrays):
    """float32 sum(|x|) over every element of every input, in ONE pallas_call.

    Each input is read from HBM exactly once, in its native dtype/layout:
    no concat/pad slab is materialized and no wrapper-side f32 up-cast
    (abs + f32 accumulation happen inside the kernel).
    """
    xs, metas = [], []
    for a in arrays:
        # Merge all leading dims (free, layout-preserving: the TPU tiled layout
        # only constrains the last two dims) -> (rows, H, W).
        if a.ndim >= 3:
            a3 = a.reshape(-1, a.shape[-2], a.shape[-1])
        elif a.ndim == 2:
            a3 = a.reshape(1, a.shape[0], a.shape[1])
        else:
            a3 = a.reshape(1, 1, -1)
        rows, h, w = (int(d) for d in a3.shape)
        row_bytes = _padded_row_bytes(h, w, a3.dtype.itemsize)
        tile_rows = max(1, min(rows, _BLOCK_BYTES_BUDGET // max(row_bytes, 1)))
        n_tiles = -(-rows // tile_rows)
        xs.append(a3)
        metas.append((tile_rows, rows, n_tiles))

    total_tiles = max(m[2] for m in metas)
    n_splits = min(_NUM_CORE_SPLITS, total_tiles)
    steps = -(-total_tiles // n_splits)            # grid steps per core split
    single_step = (n_splits == 1 and steps == 1)   # tiny-input fast path

    def kernel(*refs):
        in_refs, o_ref = refs[:-1], refs[-1]
        s = pl.program_id(1)
        g = pl.program_id(0) * steps + s           # global tile index

        def init():
            o_ref[...] = jnp.zeros_like(o_ref)

        def accumulate(x_ref, tile_rows, rows, n_tiles):
            # abs in native dtype, accumulate in f32.  The accumulator is the
            # resident (1, 8, 128) output block: one vreg RMW per step.
            v = jnp.abs(x_ref[...]).astype(jnp.float32)
            rem = rows - (n_tiles - 1) * tile_rows
            if rem != tile_rows:                   # ragged tail: mask pad rows
                valid = jnp.where(g == n_tiles - 1, rem, tile_rows)
                rid = jax.lax.broadcasted_iota(jnp.int32, v.shape, 0)
                v = jnp.where(rid < valid, v, 0.0)
            o_ref[...] = o_ref[...] + jnp.sum(v)

        if single_step:                            # no guards / masks needed
            init()
            for x_ref, meta in zip(in_refs, metas):
                accumulate(x_ref, *meta)
        else:
            pl.when(s == 0)(init)
            for x_ref, meta in zip(in_refs, metas):
                if meta[2] >= n_splits * steps:    # input spans every step
                    accumulate(x_ref, *meta)
                else:                              # gate steps past its extent
                    pl.when(g < meta[2])(
                        functools.partial(accumulate, x_ref, *meta))

    in_specs = []
    for a3, (tile_rows, rows, n_tiles) in zip(xs, metas):
        if n_tiles == 1:
            idx_map = lambda c, s: (0, 0, 0)
        else:
            # Clamp once this input is exhausted: block index stops changing,
            # so the pipeline issues no further DMAs for it.
            idx_map = (lambda nt: (
                lambda c, s: (jnp.minimum(c * steps + s, nt - 1), 0, 0)))(n_tiles)
        in_specs.append(
            pl.BlockSpec((tile_rows, a3.shape[1], a3.shape[2]), idx_map))

    partials = pl.pallas_call(
        kernel,
        out_shape=jax.ShapeDtypeStruct((n_splits, 8, 128), jnp.float32),
        grid=(n_splits, steps),
        in_specs=in_specs,
        out_specs=pl.BlockSpec((1, 8, 128), lambda c, s: (c, 0, 0)),
        compiler_params=pltpu.CompilerParams(
            dimension_semantics=("parallel", "arbitrary")),
    )(*xs)
    # Every element of a per-core (1, 8, 128) block holds that core's partial
    # (scalar broadcast accumulate); combine the per-core partials here.
    return jnp.sum(partials[:, 0, 0])


class YOLOLossPallas:
    """JAX/Pallas re-implementation of the PyTorch ``YOLOLoss`` forward pass."""

    def __init__(self, cfg):
        self.box_loss_weight = cfg['loss']['box_loss_weight']
        self.cls_loss_weight = cfg['loss']['cls_loss_weight']
        self.obj_loss_weight = cfg['loss']['obj_loss_weight']
        self.early_exit_aux_loss_weight = cfg['loss']['early_exit_aux_loss_weight']
        self.label_smoothing = cfg['loss']['label_smoothing']
        self.num_classes = cfg['model']['num_classes']
        self.focal_gamma = cfg['loss']['focal_loss_gamma']
        # FocalLoss is constructed by the reference __init__ but never invoked
        # on the exercised forward path (per-level loss is a plain abs-sum).
        # TODO(synk): add a Pallas focal/BCE kernel if real target assignment
        # is ever wired into _compute_level_loss upstream.

        bw, ow, cw = (self.box_loss_weight, self.obj_loss_weight,
                      self.cls_loss_weight)
        ee_w = self.early_exit_aux_loss_weight

        @jax.jit
        def _detector_loss(*outputs):
            batch_size = outputs[0].shape[0]
            # Each level contributes the identical abs-sum scalar to box/obj/cls
            # (faithful to the reference), so one fused abs-sum over all levels
            # covers all three terms.
            level_sum = pallas_abs_sum(*outputs) * (0.01 / batch_size)
            total = (bw + ow + cw) * level_sum
            return total, level_sum

        @jax.jit
        def _early_exit_loss(early_exit):
            batch_size = early_exit.shape[0]
            loss = pallas_abs_sum(early_exit) * (0.01 / batch_size)
            return loss * ee_w, loss

        self._detector_loss_fn = _detector_loss
        self._early_exit_loss_fn = _early_exit_loss

    # --- mirrors YOLOLoss.forward (targets/model unused by the reference math) ---
    def __call__(self, predictions, targets=None, model=None):
        if 'early_exit' in predictions:
            scaled, raw = self._early_exit_loss_fn(predictions['early_exit'])
            # Stats stay JAX scalars: no device->host sync on the hot path.
            return scaled, {'early_exit_loss': raw, 'total_loss': scaled}

        detector_outputs = predictions['outputs']
        batch = detector_outputs[0].shape[0]
        assert all(o.shape[0] == batch for o in detector_outputs)
        total, per_term = self._detector_loss_fn(*detector_outputs)
        return total, {'box_loss': per_term, 'obj_loss': per_term,
                       'cls_loss': per_term, 'total_loss': total}


if __name__ == "__main__":
    cfg = {
        'loss': {
            'box_loss_weight': 0.05,
            'cls_loss_weight': 0.5,
            'obj_loss_weight': 1.0,
            'early_exit_aux_loss_weight': 0.25,
            'label_smoothing': 0.0,
            'focal_loss_gamma': 2.0,
        },
        'model': {'num_classes': 4},
    }
    loss_fn = YOLOLossPallas(cfg)

    key = jax.random.PRNGKey(0)
    k0, k1, k2, k3, k4, k5 = jax.random.split(key, 6)
    B = 2
    C = 3 * (5 + cfg['model']['num_classes'])   # 27 channels, NCHW detector heads
    outputs = [
        jax.random.normal(k0, (B, C, 16, 16), dtype=jnp.float32),
        jax.random.normal(k1, (B, C, 8, 8), dtype=jnp.float32),
        jax.random.normal(k2, (B, C, 4, 4), dtype=jnp.float32),
    ]
    targets = jnp.zeros((B, 1, 5), dtype=jnp.float32)   # unused by this forward path

    # Main (multi-level detector) path.
    total_loss, stats = loss_fn({'outputs': outputs}, targets)
    total_loss = jax.block_until_ready(total_loss)

    # Early-exit path.
    early_exit = jax.random.normal(k3, (B, C, 16, 16), dtype=jnp.float32)
    ee_loss, ee_stats = loss_fn({'early_exit': early_exit}, targets)
    ee_loss = jax.block_until_ready(ee_loss)

    # Reference checks against plain JAX.
    ref_box = sum(jnp.sum(jnp.abs(o)) * 0.01 / B for o in outputs)
    ref_total = (cfg['loss']['box_loss_weight'] + cfg['loss']['obj_loss_weight']
                 + cfg['loss']['cls_loss_weight']) * ref_box
    ref_ee_raw = jnp.sum(jnp.abs(early_exit)) * 0.01 / B
    ref_ee = ref_ee_raw * cfg['loss']['early_exit_aux_loss_weight']

    assert jnp.allclose(total_loss, ref_total, rtol=1e-5, atol=1e-5)
    assert jnp.allclose(stats['box_loss'], ref_box, rtol=1e-5, atol=1e-5)
    assert jnp.allclose(stats['obj_loss'], ref_box, rtol=1e-5, atol=1e-5)
    assert jnp.allclose(ee_loss, ref_ee, rtol=1e-5, atol=1e-5)
    assert jnp.allclose(ee_stats['early_exit_loss'], ref_ee_raw, rtol=1e-5, atol=1e-5)

    # Exercise the multi-step / core-split / ragged-tail / native-bf16 path of
    # the fused abs-sum kernel (production-sized heads), checked vs plain JAX.
    a_med = jax.random.normal(k4, (8, C, 80, 80), dtype=jnp.float32)
    b_med = jax.random.normal(k5, (8, C, 40, 40), dtype=jnp.float32).astype(jnp.bfloat16)
    fused = jax.jit(pallas_abs_sum)
    got = jax.block_until_ready(fused(a_med, b_med))
    want = (jnp.sum(jnp.abs(a_med))
            + jnp.sum(jnp.abs(b_med).astype(jnp.float32)))
    assert jnp.allclose(got, want, rtol=1e-4), (got, want)

    print("KERNEL_OK")
</pallas_src>

<mosaic_0001>
module attributes {stable_mosaic.version = 11 : i64} {
  func.func @kernel(%arg0: i32, %arg1: i32, %arg2: memref<54x16x16xf32, #tpu.memory_space<vmem>>, %arg3: memref<54x8x8xf32, #tpu.memory_space<vmem>>, %arg4: memref<54x4x4xf32, #tpu.memory_space<vmem>>, %arg5: memref<1x8x128xf32, #tpu.memory_space<vmem>>) attributes {dimension_semantics = [#tpu.dimension_semantics<parallel>, #tpu.dimension_semantics<arbitrary>], iteration_bounds = array<i64: 1, 1>, scalar_prefetch = 0 : i64, scratch_operands = 0 : i64, tpu.core_type = #tpu.core_type<tc>, window_params = [{pipeline_mode = #tpu.pipeline_mode<synchronous>, transform_indices = @transform_0, window_bounds = array<i64: 54, 16, 16>}, {pipeline_mode = #tpu.pipeline_mode<synchronous>, transform_indices = @transform_1, window_bounds = array<i64: 54, 8, 8>}, {pipeline_mode = #tpu.pipeline_mode<synchronous>, transform_indices = @transform_2, window_bounds = array<i64: 54, 4, 4>}, {transform_indices = @transform_3, window_bounds = array<i64: 1, 8, 128>}]} {
    %cst = arith.constant 0.000000e+00 : f32
    %0 = vector.broadcast %cst : f32 to vector<1x8x128xf32>
    %c0 = arith.constant 0 : index
    %c0_0 = arith.constant 0 : index
    %c0_1 = arith.constant 0 : index
    %1 = vector.load %arg5[%c0, %c0_0, %c0_1] : memref<1x8x128xf32, #tpu.memory_space<vmem>>, vector<1x8x128xf32>
    tpu.vector_store %arg5[%c0, %c0_0, %c0_1], %0 {strides = array<i32>} : memref<1x8x128xf32, #tpu.memory_space<vmem>>, vector<1x8x128xf32>,
    %c0_2 = arith.constant 0 : index
    %c0_3 = arith.constant 0 : index
    %c0_4 = arith.constant 0 : index
    %2 = vector.load %arg2[%c0_2, %c0_3, %c0_4] : memref<54x16x16xf32, #tpu.memory_space<vmem>>, vector<54x16x16xf32>
    %3 = math.absf %2 : vector<54x16x16xf32>
    %c0_5 = arith.constant 0 : index
    %c0_6 = arith.constant 0 : index
    %c0_7 = arith.constant 0 : index
    %4 = vector.load %arg5[%c0_5, %c0_6, %c0_7] : memref<1x8x128xf32, #tpu.memory_space<vmem>>, vector<1x8x128xf32>
    %5 = vector.shape_cast %3 : vector<54x16x16xf32> to vector<1x54x16x16xf32>
    %cst_8 = arith.constant dense<0.000000e+00> : vector<1xf32>
    %6 = vector.multi_reduction <add>, %5, %cst_8 [1, 2, 3] : vector<1x54x16x16xf32> to vector<1xf32>
    %7 = vector.shape_cast %6 : vector<1xf32> to vector<1x1x1x1xf32>
    %8 = vector.extract %7[0, 0, 0, 0] : f32 from vector<1x1x1x1xf32>
    %9 = vector.broadcast %8 : f32 to vector<1x8x128xf32>
    %10 = arith.addf %4, %9 : vector<1x8x128xf32>
    %c0_9 = arith.constant 0 : index
    %c0_10 = arith.constant 0 : index
    %c0_11 = arith.constant 0 : index
    %11 = vector.load %arg5[%c0_9, %c0_10, %c0_11] : memref<1x8x128xf32, #tpu.memory_space<vmem>>, vector<1x8x128xf32>
    tpu.vector_store %arg5[%c0_9, %c0_10, %c0_11], %10 {strides = array<i32>} : memref<1x8x128xf32, #tpu.memory_space<vmem>>, vector<1x8x128xf32>,
    %c0_12 = arith.constant 0 : index
    %c0_13 = arith.constant 0 : index
    %c0_14 = arith.constant 0 : index
    %12 = vector.load %arg3[%c0_12, %c0_13, %c0_14] : memref<54x8x8xf32, #tpu.memory_space<vmem>>, vector<54x8x8xf32>
    %13 = math.absf %12 : vector<54x8x8xf32>
    %c0_15 = arith.constant 0 : index
    %c0_16 = arith.constant 0 : index
    %c0_17 = arith.constant 0 : index
    %14 = vector.load %arg5[%c0_15, %c0_16, %c0_17] : memref<1x8x128xf32, #tpu.memory_space<vmem>>, vector<1x8x128xf32>
    %15 = vector.shape_cast %13 : vector<54x8x8xf32> to vector<1x54x8x8xf32>
    %cst_18 = arith.constant dense<0.000000e+00> : vector<1xf32>
    %16 = vector.multi_reduction <add>, %15, %cst_18 [1, 2, 3] : vector<1x54x8x8xf32> to vector<1xf32>
    %17 = vector.shape_cast %16 : vector<1xf32> to vector<1x1x1x1xf32>
    %18 = vector.extract %17[0, 0, 0, 0] : f32 from vector<1x1x1x1xf32>
    %19 = vector.broadcast %18 : f32 to vector<1x8x128xf32>
    %20 = arith.addf %14, %19 : vector<1x8x128xf32>
    %c0_19 = arith.constant 0 : index
    %c0_20 = arith.constant 0 : index
    %c0_21 = arith.constant 0 : index
    %21 = vector.load %arg5[%c0_19, %c0_20, %c0_21] : memref<1x8x128xf32, #tpu.memory_space<vmem>>, vector<1x8x128xf32>
    tpu.vector_store %arg5[%c0_19, %c0_20, %c0_21], %20 {strides = array<i32>} : memref<1x8x128xf32, #tpu.memory_space<vmem>>, vector<1x8x128xf32>,
    %c0_22 = arith.constant 0 : index
    %c0_23 = arith.constant 0 : index
    %c0_24 = arith.constant 0 : index
    %22 = vector.load %arg4[%c0_22, %c0_23, %c0_24] : memref<54x4x4xf32, #tpu.memory_space<vmem>>, vector<54x4x4xf32>
    %23 = math.absf %22 : vector<54x4x4xf32>
    %c0_25 = arith.constant 0 : index
    %c0_26 = arith.constant 0 : index
    %c0_27 = arith.constant 0 : index
    %24 = vector.load %arg5[%c0_25, %c0_26, %c0_27] : memref<1x8x128xf32, #tpu.memory_space<vmem>>, vector<1x8x128xf32>
    %25 = vector.shape_cast %23 : vector<54x4x4xf32> to vector<1x54x4x4xf32>
    %cst_28 = arith.constant dense<0.000000e+00> : vector<1xf32>
    %26 = vector.multi_reduction <add>, %25, %cst_28 [1, 2, 3] : vector<1x54x4x4xf32> to vector<1xf32>
    %27 = vector.shape_cast %26 : vector<1xf32> to vector<1x1x1x1xf32>
    %28 = vector.extract %27[0, 0, 0, 0] : f32 from vector<1x1x1x1xf32>
    %29 = vector.broadcast %28 : f32 to vector<1x8x128xf32>
    %30 = arith.addf %24, %29 : vector<1x8x128xf32>
    %c0_29 = arith.constant 0 : index
    %c0_30 = arith.constant 0 : index
    %c0_31 = arith.constant 0 : index
    %31 = vector.load %arg5[%c0_29, %c0_30, %c0_31] : memref<1x8x128xf32, #tpu.memory_space<vmem>>, vector<1x8x128xf32>
    tpu.vector_store %arg5[%c0_29, %c0_30, %c0_31], %30 {strides = array<i32>} : memref<1x8x128xf32, #tpu.memory_space<vmem>>, vector<1x8x128xf32>,
    return
  }
  func.func @transform_0(%arg0: i32, %arg1: i32) -> (i32, i32, i32) {
    %c0_i32 = arith.constant 0 : i32
    %c0_i32_0 = arith.constant 0 : i32
    %c0_i32_1 = arith.constant 0 : i32
    %c0_i32_2 = arith.constant 0 : i32
    return %c0_i32, %c0_i32_0, %c0_i32_1 : i32, i32, i32
  }
  func.func @transform_1(%arg0: i32, %arg1: i32) -> (i32, i32, i32) {
    %c0_i32 = arith.constant 0 : i32
    %c0_i32_0 = arith.constant 0 : i32
    %c0_i32_1 = arith.constant 0 : i32
    %c0_i32_2 = arith.constant 0 : i32
    return %c0_i32, %c0_i32_0, %c0_i32_1 : i32, i32, i32
  }
  func.func @transform_2(%arg0: i32, %arg1: i32) -> (i32, i32, i32) {
    %c0_i32 = arith.constant 0 : i32
    %c0_i32_0 = arith.constant 0 : i32
    %c0_i32_1 = arith.constant 0 : i32
    %c0_i32_2 = arith.constant 0 : i32
    return %c0_i32, %c0_i32_0, %c0_i32_1 : i32, i32, i32
  }
  func.func @transform_3(%arg0: i32, %arg1: i32) -> (i32, i32, i32) {
    %c0_i32 = arith.constant 0 : i32
    %c0_i32_0 = arith.constant 0 : i32
    %c0_i32_1 = arith.constant 0 : i32
    return %arg0, %c0_i32, %c0_i32_0 : i32, i32, i32
  }
}

</mosaic_0001>

<llo_original>
// kernel: _detector_loss.1
$region0: #{_detector_loss.1}
  #allocation0 [shape = 'u32[]', space=smem, size = 0x4, offset = 0x4, fixed_abs, tag = 'smem constant byte address 0x4 - core index']
  #allocation1 [shape = 'u32[144,128]{1,0:T(1,128)}', space=vmem, size = 0x12000, scoped, tag = 'internal scratch']
  %s0 = inlined_call_operand.vmem [shape: f32[54,16,16], index: 0, kind: input, shape index: {}]
  %s1 = inlined_call_operand.vmem [shape: f32[54,8,8], index: 1, kind: input, shape index: {}]
  %s2 = inlined_call_operand.vmem [shape: f32[54,4,4], index: 2, kind: input, shape index: {}]
  %s3 = inlined_call_operand.vmem [shape: f32[1,8,128], index: 3, kind: output, shape index: {}]
  %s4 = sld [smem:[#allocation0]]
  $region22: #{_detector_loss.1} parent=0
    _
  %s6 = ssub.s32 1, %s4
  %s7 = scalar_select 0, %s6, %s4
  // Predicated region
  $region2: #{_detector_loss.1} parent=0 // pred_check
    _
  $region3: #{_detector_loss.1} parent=0 // pred_check_branch
    %9 = sbr.rel (0) target = $region5
  $region4: #{_detector_loss.1} parent=0 // pred_region
    _
  $region5: #{_detector_loss.1} parent=0 // pred_fallthru
    _
  // Predicated region
  $region6: #{_detector_loss.1} parent=0 // pred_check
    _
  $region7: #{_detector_loss.1} parent=0 // pred_check_branch
    %11 = sbr.rel (0) target = $region9
  $region8: #{_detector_loss.1} parent=0 // pred_region
    _
  $region9: #{_detector_loss.1} parent=0 // pred_fallthru
    _
  // Predicated region
  $region10: #{_detector_loss.1} parent=0 // pred_check
    _
  $region11: #{_detector_loss.1} parent=0 // pred_check_branch
    %13 = sbr.rel (0) target = $region13
  $region12: #{_detector_loss.1} parent=0 // pred_region
    _
  $region13: #{_detector_loss.1} parent=0 // pred_fallthru
    _
  %14 = vst [vmem:[%s3] sm:$0xff] 0.0
  %v15 = vld [vmem:[%s0] sm:$0xff]
  %v16 = vld [vmem:[%s0 + $0x8] sm:$0xff]
  %v17 = vld [vmem:[%s0 + $0x10] sm:$0xff]
  %v18 = vld [vmem:[%s0 + $0x18] sm:$0xff]
  %v19 = vld [vmem:[%s0 + $0x20] sm:$0xff]
  %v20 = vld [vmem:[%s0 + $0x28] sm:$0xff]
  %v21 = vld [vmem:[%s0 + $0x30] sm:$0xff]
  %v22 = vld [vmem:[%s0 + $0x38] sm:$0xff]
  %v23 = vld [vmem:[%s0 + $0x40] sm:$0xff]
  %v24 = vld [vmem:[%s0 + $0x48] sm:$0xff]
  %v25 = vld [vmem:[%s0 + $0x50] sm:$0xff]
  %v26 = vld [vmem:[%s0 + $0x58] sm:$0xff]
  %v27 = vld [vmem:[%s0 + $0x60] sm:$0xff]
  %v28 = vld [vmem:[%s0 + $0x68] sm:$0xff]
  %v29 = vld [vmem:[%s0 + $0x70] sm:$0xff]
  %v30 = vld [vmem:[%s0 + $0x78] sm:$0xff]
  %v31 = vld [vmem:[%s0 + $0x80] sm:$0xff]
  %v32 = vld [vmem:[%s0 + $0x88] sm:$0xff]
  %v33 = vld [vmem:[%s0 + $0x90] sm:$0xff]
  %v34 = vld [vmem:[%s0 + $0x98] sm:$0xff]
  %v35 = vld [vmem:[%s0 + $0xa0] sm:$0xff]
  %v36 = vld [vmem:[%s0 + $0xa8] sm:$0xff]
  %v37 = vld [vmem:[%s0 + $0xb0] sm:$0xff]
  %v38 = vld [vmem:[%s0 + $0xb8] sm:$0xff]
  %v39 = vld [vmem:[%s0 + $0xc0] sm:$0xff]
  %v40 = vld [vmem:[%s0 + $0xc8] sm:$0xff]
  %v41 = vld [vmem:[%s0 + $0xd0] sm:$0xff]
  %v42 = vld [vmem:[%s0 + $0xd8] sm:$0xff]
  %v43 = vld [vmem:[%s0 + $0xe0] sm:$0xff]
  %v44 = vld [vmem:[%s0 + $0xe8] sm:$0xff]
  %v45 = vld [vmem:[%s0 + $0xf0] sm:$0xff]
  %v46 = vld [vmem:[%s0 + $0xf8] sm:$0xff]
  %v47 = vld [vmem:[%s0 + $0x100] sm:$0xff]
  %v48 = vld [vmem:[%s0 + $0x108] sm:$0xff]
  %v49 = vld [vmem:[%s0 + $0x110] sm:$0xff]
  %v50 = vld [vmem:[%s0 + $0x118] sm:$0xff]
  %v51 = vld [vmem:[%s0 + $0x120] sm:$0xff]
  %v52 = vld [vmem:[%s0 + $0x128] sm:$0xff]
  %v53 = vld [vmem:[%s0 + $0x130] sm:$0xff]
  %v54 = vld [vmem:[%s0 + $0x138] sm:$0xff]
  %v55 = vld [vmem:[%s0 + $0x140] sm:$0xff]
  %v56 = vld [vmem:[%s0 + $0x148] sm:$0xff]
  %v57 = vld [vmem:[%s0 + $0x150] sm:$0xff]
  %v58 = vld [vmem:[%s0 + $0x158] sm:$0xff]
  %v59 = vld [vmem:[%s0 + $0x160] sm:$0xff]
  %v60 = vld [vmem:[%s0 + $0x168] sm:$0xff]
  %v61 = vld [vmem:[%s0 + $0x170] sm:$0xff]
  %v62 = vld [vmem:[%s0 + $0x178] sm:$0xff]
  %v63 = vld [vmem:[%s0 + $0x180] sm:$0xff]
  %v64 = vld [vmem:[%s0 + $0x188] sm:$0xff]
  %v65 = vld [vmem:[%s0 + $0x190] sm:$0xff]
  %v66 = vld [vmem:[%s0 + $0x198] sm:$0xff]
  %v67 = vld [vmem:[%s0 + $0x1a0] sm:$0xff]
  %v68 = vld [vmem:[%s0 + $0x1a8] sm:$0xff]
  %v69 = vld [vmem:[%s0 + $0x1b0] sm:$0xff]
  %v70 = vld [vmem:[%s0 + $0x1b8] sm:$0xff]
  %v71 = vld [vmem:[%s0 + $0x1c0] sm:$0xff]
  %v72 = vld [vmem:[%s0 + $0x1c8] sm:$0xff]
  %v73 = vld [vmem:[%s0 + $0x1d0] sm:$0xff]
  %v74 = vld [vmem:[%s0 + $0x1d8] sm:$0xff]
  %v75 = vld [vmem:[%s0 + $0x1e0] sm:$0xff]
  %v76 = vld [vmem:[%s0 + $0x1e8] sm:$0xff]
  %v77 = vld [vmem:[%s0 + $0x1f0] sm:$0xff]
  %v78 = vld [vmem:[%s0 + $0x1f8] sm:$0xff]
  %v79 = vld [vmem:[%s0 + $0x200] sm:$0xff]
  %v80 = vld [vmem:[%s0 + $0x208] sm:$0xff]
  %v81 = vld [vmem:[%s0 + $0x210] sm:$0xff]
  %v82 = vld [vmem:[%s0 + $0x218] sm:$0xff]
  %v83 = vld [vmem:[%s0 + $0x220] sm:$0xff]
  %v84 = vld [vmem:[%s0 + $0x228] sm:$0xff]
  %v85 = vld [vmem:[%s0 + $0x230] sm:$0xff]
  %v86 = vld [vmem:[%s0 + $0x238] sm:$0xff]
  %v87 = vld [vmem:[%s0 + $0x240] sm:$0xff]
  %v88 = vld [vmem:[%s0 + $0x248] sm:$0xff]
  %v89 = vld [vmem:[%s0 + $0x250] sm:$0xff]
  %v90 = vld [vmem:[%s0 + $0x258] sm:$0xff]
  %v91 = vld [vmem:[%s0 + $0x260] sm:$0xff]
  %v92 = vld [vmem:[%s0 + $0x268] sm:$0xff]
  %v93 = vld [vmem:[%s0 + $0x270] sm:$0xff]
  %v94 = vld [vmem:[%s0 + $0x278] sm:$0xff]
  %v95 = vld [vmem:[%s0 + $0x280] sm:$0xff]
  %v96 = vld [vmem:[%s0 + $0x288] sm:$0xff]
  %v97 = vld [vmem:[%s0 + $0x290] sm:$0xff]
  %v98 = vld [vmem:[%s0 + $0x298] sm:$0xff]
  %v99 = vld [vmem:[%s0 + $0x2a0] sm:$0xff]
  %v100 = vld [vmem:[%s0 + $0x2a8] sm:$0xff]
  %v101 = vld [vmem:[%s0 + $0x2b0] sm:$0xff]
  %v102 = vld [vmem:[%s0 + $0x2b8] sm:$0xff]
  %v103 = vld [vmem:[%s0 + $0x2c0] sm:$0xff]
  %v104 = vld [vmem:[%s0 + $0x2c8] sm:$0xff]
  %v105 = vld [vmem:[%s0 + $0x2d0] sm:$0xff]
  %v106 = vld [vmem:[%s0 + $0x2d8] sm:$0xff]
  %v107 = vld [vmem:[%s0 + $0x2e0] sm:$0xff]
  %v108 = vld [vmem:[%s0 + $0x2e8] sm:$0xff]
  %v109 = vld [vmem:[%s0 + $0x2f0] sm:$0xff]
  %v110 = vld [vmem:[%s0 + $0x2f8] sm:$0xff]
  %v111 = vld [vmem:[%s0 + $0x300] sm:$0xff]
  %v112 = vld [vmem:[%s0 + $0x308] sm:$0xff]
  %v113 = vld [vmem:[%s0 + $0x310] sm:$0xff]
  %v114 = vld [vmem:[%s0 + $0x318] sm:$0xff]
  %v115 = vld [vmem:[%s0 + $0x320] sm:$0xff]
  %v116 = vld [vmem:[%s0 + $0x328] sm:$0xff]
  %v117 = vld [vmem:[%s0 + $0x330] sm:$0xff]
  %v118 = vld [vmem:[%s0 + $0x338] sm:$0xff]
  %v119 = vld [vmem:[%s0 + $0x340] sm:$0xff]
  %v120 = vld [vmem:[%s0 + $0x348] sm:$0xff]
  %v121 = vld [vmem:[%s0 + $0x350] sm:$0xff]
  %v122 = vld [vmem:[%s0 + $0x358] sm:$0xff]
  %v123 = vand.u32 2147483647, %v15
  %v124 = vand.u32 2147483647, %v16
  %v125 = vand.u32 2147483647, %v17
  %v126 = vand.u32 2147483647, %v18
  %v127 = vand.u32 2147483647, %v19
  %v128 = vand.u32 2147483647, %v20
  %v129 = vand.u32 2147483647, %v21
  %v130 = vand.u32 2147483647, %v22
  %v131 = vand.u32 2147483647, %v23
  %v132 = vand.u32 2147483647, %v24
  %v133 = vand.u32 2147483647, %v25
  %v134 = vand.u32 2147483647, %v26
  %v135 = vand.u32 2147483647, %v27
  %v136 = vand.u32 2147483647, %v28
  %v137 = vand.u32 2147483647, %v29
  %v138 = vand.u32 2147483647, %v30
  %v139 = vand.u32 2147483647, %v31
  %v140 = vand.u32 2147483647, %v32
  %v141 = vand.u32 2147483647, %v33
  %v142 = vand.u32 2147483647, %v34
  %v143 = vand.u32 2147483647, %v35
  %v144 = vand.u32 2147483647, %v36
  %v145 = vand.u32 2147483647, %v37
  %v146 = vand.u32 2147483647, %v38
  %v147 = vand.u32 2147483647, %v39
  %v148 = vand.u32 2147483647, %v40
  %v149 = vand.u32 2147483647, %v41
  %v150 = vand.u32 2147483647, %v42
  %v151 = vand.u32 2147483647, %v43
  %v152 = vand.u32 2147483647, %v44
  %v153 = vand.u32 2147483647, %v45
  %v154 = vand.u32 2147483647, %v46
  %v155 = vand.u32 2147483647, %v47
  %v156 = vand.u32 2147483647, %v48
  %v157 = vand.u32 2147483647, %v49
  %v158 = vand.u32 2147483647, %v50
  %v159 = vand.u32 2147483647, %v51
  %v160 = vand.u32 2147483647, %v52
  %v161 = vand.u32 2147483647, %v53
  %v162 = vand.u32 2147483647, %v54
  %v163 = vand.u32 2147483647, %v55
  %v164 = vand.u32 2147483647, %v56
  %v165 = vand.u32 2147483647, %v57
  %v166 = vand.u32 2147483647, %v58
  %v167 = vand.u32 2147483647, %v59
  %v168 = vand.u32 2147483647, %v60
  %v169 = vand.u32 2147483647, %v61
  %v170 = vand.u32 2147483647, %v62
  %v171 = vand.u32 2147483647, %v63
  %v172 = vand.u32 2147483647, %v64
  %v173 = vand.u32 2147483647, %v65
  %v174 = vand.u32 2147483647, %v66
  %v175 = vand.u32 2147483647, %v67
  %v176 = vand.u32 2147483647, %v68
  %v177 = vand.u32 2147483647, %v69
  %v178 = vand.u32 2147483647, %v70
  %v179 = vand.u32 2147483647, %v71
  %v180 = vand.u32 2147483647, %v72
  %v181 = vand.u32 2147483647, %v73
  %v182 = vand.u32 2147483647, %v74
  %v183 = vand.u32 2147483647, %v75
  %v184 = vand.u32 2147483647, %v76
  %v185 = vand.u32 2147483647, %v77
  %v186 = vand.u32 2147483647, %v78
  %v187 = vand.u32 2147483647, %v79
  %v188 = vand.u32 2147483647, %v80
  %v189 = vand.u32 2147483647, %v81
  %v190 = vand.u32 2147483647, %v82
  %v191 = vand.u32 2147483647, %v83
  %v192 = vand.u32 2147483647, %v84
  %v193 = vand.u32 2147483647, %v85
  %v194 = vand.u32 2147483647, %v86
  %v195 = vand.u32 2147483647, %v87
  %v196 = vand.u32 2147483647, %v88
  %v197 = vand.u32 2147483647, %v89
  %v198 = vand.u32 2147483647, %v90
  %v199 = vand.u32 2147483647, %v91
  %v200 = vand.u32 2147483647, %v92
  %v201 = vand.u32 2147483647, %v93
  %v202 = vand.u32 2147483647, %v94
  %v203 = vand.u32 2147483647, %v95
  %v204 = vand.u32 2147483647, %v96
  %v205 = vand.u32 2147483647, %v97
  %v206 = vand.u32 2147483647, %v98
  %v207 = vand.u32 2147483647, %v99
  %v208 = vand.u32 2147483647, %v100
  %v209 = vand.u32 2147483647, %v101
  %v210 = vand.u32 2147483647, %v102
  %v211 = vand.u32 2147483647, %v103
  %v212 = vand.u32 2147483647, %v104
  %v213 = vand.u32 2147483647, %v105
  %v214 = vand.u32 2147483647, %v106
  %v215 = vand.u32 2147483647, %v107
  %v216 = vand.u32 2147483647, %v108
  %v217 = vand.u32 2147483647, %v109
  %v218 = vand.u32 2147483647, %v110
  %v219 = vand.u32 2147483647, %v111
  %v220 = vand.u32 2147483647, %v112
  %v221 = vand.u32 2147483647, %v113
  %v222 = vand.u32 2147483647, %v114
  %v223 = vand.u32 2147483647, %v115
  %v224 = vand.u32 2147483647, %v116
  %v225 = vand.u32 2147483647, %v117
  %v226 = vand.u32 2147483647, %v118
  %v227 = vand.u32 2147483647, %v119
  %v228 = vand.u32 2147483647, %v120
  %v229 = vand.u32 2147483647, %v121
  %v230 = vand.u32 2147483647, %v122
  %v231 = vld [vmem:[%s3] sm:$0xff]
  %vm232 = vcmask 130048
  %v233 = vsel %vm232, %v123, 0.0
  %v234 = vsel %vm232, %v124, 0.0
  %v235 = vadd.f32 %v233, %v234
  %v236 = vsel %vm232, %v125, 0.0
  %v237 = vadd.f32 %v235, %v236
  %v238 = vsel %vm232, %v126, 0.0
  %v239 = vadd.f32 %v237, %v238
  %v240 = vsel %vm232, %v127, 0.0
  %v241 = vadd.f32 %v239, %v240
  %v242 = vsel %vm232, %v128, 0.0
  %v243 = vadd.f32 %v241, %v242
  %v244 = vsel %vm232, %v129, 0.0
  %v245 = vadd.f32 %v243, %v244
  %v246 = vsel %vm232, %v130, 0.0
  %v247 = vadd.f32 %v245, %v246
  %v248 = vsel %vm232, %v131, 0.0
  %v249 = vadd.f32 %v247, %v248
  %v250 = vsel %vm232, %v132, 0.0
  %v251 = vadd.f32 %v249, %v250
  %v252 = vsel %vm232, %v133, 0.0
  %v253 = vadd.f32 %v251, %v252
  %v254 = vsel %vm232, %v134, 0.0
  %v255 = vadd.f32 %v253, %v254
  %v256 = vsel %vm232, %v135, 0.0
  %v257 = vadd.f32 %v255, %v256
  %v258 = vsel %vm232, %v136, 0.0
  %v259 = vadd.f32 %v257, %v258
  %v260 = vsel %vm232, %v137, 0.0
  %v261 = vadd.f32 %v259, %v260
  %v262 = vsel %vm232, %v138, 0.0
  %v263 = vadd.f32 %v261, %v262
  %v264 = vsel %vm232, %v139, 0.0
  %v265 = vadd.f32 %v263, %v264
  %v266 = vsel %vm232, %v140, 0.0
  %v267 = vadd.f32 %v265, %v266
  %v268 = vsel %vm232, %v141, 0.0
  %v269 = vadd.f32 %v267, %v268
  %v270 = vsel %vm232, %v142, 0.0
  %v271 = vadd.f32 %v269, %v270
  %v272 = vsel %vm232, %v143, 0.0
  %v273 = vadd.f32 %v271, %v272
  %v274 = vsel %vm232, %v144, 0.0
  %v275 = vadd.f32 %v273, %v274
  %v276 = vsel %vm232, %v145, 0.0
  %v277 = vadd.f32 %v275, %v276
  %v278 = vsel %vm232, %v146, 0.0
  %v279 = vadd.f32 %v277, %v278
  %v280 = vsel %vm232, %v147, 0.0
  %v281 = vadd.f32 %v279, %v280
  %v282 = vsel %vm232, %v148, 0.0
  %v283 = vadd.f32 %v281, %v282
  %v284 = vsel %vm232, %v149, 0.0
  %v285 = vadd.f32 %v283, %v284
  %v286 = vsel %vm232, %v150, 0.0
  %v287 = vadd.f32 %v285, %v286
  %v288 = vsel %vm232, %v151, 0.0
  %v289 = vadd.f32 %v287, %v288
  %v290 = vsel %vm232, %v152, 0.0
  %v291 = vadd.f32 %v289, %v290
  %v292 = vsel %vm232, %v153, 0.0
  %v293 = vadd.f32 %v291, %v292
  %v294 = vsel %vm232, %v154, 0.0
  %v295 = vadd.f32 %v293, %v294
  %v296 = vsel %vm232, %v155, 0.0
  %v297 = vadd.f32 %v295, %v296
  %v298 = vsel %vm232, %v156, 0.0
  %v299 = vadd.f32 %v297, %v298
  %v300 = vsel %vm232, %v157, 0.0
  %v301 = vadd.f32 %v299, %v300
  %v302 = vsel %vm232, %v158, 0.0
  %v303 = vadd.f32 %v301, %v302
  %v304 = vsel %vm232, %v159, 0.0
  %v305 = vadd.f32 %v303, %v304
  %v306 = vsel %vm232, %v160, 0.0
  %v307 = vadd.f32 %v305, %v306
  %v308 = vsel %vm232, %v161, 0.0
  %v309 = vadd.f32 %v307, %v308
  %v310 = vsel %vm232, %v162, 0.0
  %v311 = vadd.f32 %v309, %v310
  %v312 = vsel %vm232, %v163, 0.0
  %v313 = vadd.f32 %v311, %v312
  %v314 = vsel %vm232, %v164, 0.0
  %v315 = vadd.f32 %v313, %v314
  %v316 = vsel %vm232, %v165, 0.0
  %v317 = vadd.f32 %v315, %v316
  %v318 = vsel %vm232, %v166, 0.0
  %v319 = vadd.f32 %v317, %v318
  %v320 = vsel %vm232, %v167, 0.0
  %v321 = vadd.f32 %v319, %v320
  %v322 = vsel %vm232, %v168, 0.0
  %v323 = vadd.f32 %v321, %v322
  %v324 = vsel %vm232, %v169, 0.0
  %v325 = vadd.f32 %v323, %v324
  %v326 = vsel %vm232, %v170, 0.0
  %v327 = vadd.f32 %v325, %v326
  %v328 = vsel %vm232, %v171, 0.0
  %v329 = vadd.f32 %v327, %v328
  %v330 = vsel %vm232, %v172, 0.0
  %v331 = vadd.f32 %v329, %v330
  %v332 = vsel %vm232, %v173, 0.0
  %v333 = vadd.f32 %v331, %v332
  %v334 = vsel %vm232, %v174, 0.0
  %v335 = vadd.f32 %v333, %v334
  %v336 = vsel %vm232, %v175, 0.0
  %v337 = vadd.f32 %v335, %v336
  %v338 = vsel %vm232, %v176, 0.0
  %v339 = vadd.f32 %v337, %v338
  %v340 = vsel %vm232, %v177, 0.0
  %v341 = vadd.f32 %v339, %v340
  %v342 = vsel %vm232, %v178, 0.0
  %v343 = vadd.f32 %v341, %v342
  %v344 = vsel %vm232, %v179, 0.0
  %v345 = vadd.f32 %v343, %v344
  %v346 = vsel %vm232, %v180, 0.0
  %v347 = vadd.f32 %v345, %v346
  %v348 = vsel %vm232, %v181, 0.0
  %v349 = vadd.f32 %v347, %v348
  %v350 = vsel %vm232, %v182, 0.0
  %v351 = vadd.f32 %v349, %v350
  %v352 = vsel %vm232, %v183, 0.0
  %v353 = vadd.f32 %v351, %v352
  %v354 = vsel %vm232, %v184, 0.0
  %v355 = vadd.f32 %v353, %v354
  %v356 = vsel %vm232, %v185, 0.0
  %v357 = vadd.f32 %v355, %v356
  %v358 = vsel %vm232, %v186, 0.0
  %v359 = vadd.f32 %v357, %v358
  %v360 = vsel %vm232, %v187, 0.0
  %v361 = vadd.f32 %v359, %v360
  %v362 = vsel %vm232, %v188, 0.0
  %v363 = vadd.f32 %v361, %v362
  %v364 = vsel %vm232, %v189, 0.0
  %v365 = vadd.f32 %v363, %v364
  %v366 = vsel %vm232, %v190, 0.0
  %v367 = vadd.f32 %v365, %v366
  %v368 = vsel %vm232, %v191, 0.0
  %v369 = vadd.f32 %v367, %v368
  %v370 = vsel %vm232, %v192, 0.0
  %v371 = vadd.f32 %v369, %v370
  %v372 = vsel %vm232, %v193, 0.0
  %v373 = vadd.f32 %v371, %v372
  %v374 = vsel %vm232, %v194, 0.0
  %v375 = vadd.f32 %v373, %v374
  %v376 = vsel %vm232, %v195, 0.0
  %v377 = vadd.f32 %v375, %v376
  %v378 = vsel %vm232, %v196, 0.0
  %v379 = vadd.f32 %v377, %v378
  %v380 = vsel %vm232, %v197, 0.0
  %v381 = vadd.f32 %v379, %v380
  %v382 = vsel %vm232, %v198, 0.0
  %v383 = vadd.f32 %v381, %v382
  %v384 = vsel %vm232, %v199, 0.0
  %v385 = vadd.f32 %v383, %v384
  %v386 = vsel %vm232, %v200, 0.0
  %v387 = vadd.f32 %v385, %v386
  %v388 = vsel %vm232, %v201, 0.0
  %v389 = vadd.f32 %v387, %v388
  %v390 = vsel %vm232, %v202, 0.0
  %v391 = vadd.f32 %v389, %v390
  %v392 = vsel %vm232, %v203, 0.0
  %v393 = vadd.f32 %v391, %v392
  %v394 = vsel %vm232, %v204, 0.0
  %v395 = vadd.f32 %v393, %v394
  %v396 = vsel %vm232, %v205, 0.0
  %v397 = vadd.f32 %v395, %v396
  %v398 = vsel %vm232, %v206, 0.0
  %v399 = vadd.f32 %v397, %v398
  %v400 = vsel %vm232, %v207, 0.0
  %v401 = vadd.f32 %v399, %v400
  %v402 = vsel %vm232, %v208, 0.0
  %v403 = vadd.f32 %v401, %v402
  %v404 = vsel %vm232, %v209, 0.0
  %v405 = vadd.f32 %v403, %v404
  %v406 = vsel %vm232, %v210, 0.0
  %v407 = vadd.f32 %v405, %v406
  %v408 = vsel %vm232, %v211, 0.0
  %v409 = vadd.f32 %v407, %v408
  %v410 = vsel %vm232, %v212, 0.0
  %v411 = vadd.f32 %v409, %v410
  %v412 = vsel %vm232, %v213, 0.0
  %v413 = vadd.f32 %v411, %v412
  %v414 = vsel %vm232, %v214, 0.0
  %v415 = vadd.f32 %v413, %v414
  %v416 = vsel %vm232, %v215, 0.0
  %v417 = vadd.f32 %v415, %v416
  %v418 = vsel %vm232, %v216, 0.0
  %v419 = vadd.f32 %v417, %v418
  %v420 = vsel %vm232, %v217, 0.0
  %v421 = vadd.f32 %v419, %v420
  %v422 = vsel %vm232, %v218, 0.0
  %v423 = vadd.f32 %v421, %v422
  %v424 = vsel %vm232, %v219, 0.0
  %v425 = vadd.f32 %v423, %v424
  %v426 = vsel %vm232, %v220, 0.0
  %v427 = vadd.f32 %v425, %v426
  %v428 = vsel %vm232, %v221, 0.0
  %v429 = vadd.f32 %v427, %v428
  %v430 = vsel %vm232, %v222, 0.0
  %v431 = vadd.f32 %v429, %v430
  %v432 = vsel %vm232, %v223, 0.0
  %v433 = vadd.f32 %v431, %v432
  %v434 = vsel %vm232, %v224, 0.0
  %v435 = vadd.f32 %v433, %v434
  %v436 = vsel %vm232, %v225, 0.0
  %v437 = vadd.f32 %v435, %v436
  %v438 = vsel %vm232, %v226, 0.0
  %v439 = vadd.f32 %v437, %v438
  %v440 = vsel %vm232, %v227, 0.0
  %v441 = vadd.f32 %v439, %v440
  %v442 = vsel %vm232, %v228, 0.0
  %v443 = vadd.f32 %v441, %v442
  %v444 = vsel %vm232, %v229, 0.0
  %v445 = vadd.f32 %v443, %v444
  %v446 = vsel %vm232, %v230, 0.0
  %v447 = vadd.f32 %v445, %v446
  %448 = vadd.xlane.f32.xlu0 %v447
  %v449 = vpop.xlane.xlu0 %448
  %v450 = vrot.slane %v449, 4
  %v451 = vadd.f32 %v449, %v450
  %v452 = vrot.slane %v451, 2
  %v453 = vadd.f32 %v451, %v452
  %v454 = vrot.slane %v453, 1
  %v455 = vadd.f32 %v453, %v454
  %s456 = vtos %v455
  %v457 = vstv %s456
  %v458 = vadd.f32 %v231, %v457
  %459 = vst [vmem:[%s3] sm:$0xff] %v458
  %v460 = vld [vmem:[%s1] sm:$0xff]
  %v461 = vld [vmem:[%s1 + $0x8] sm:$0xff]
  %v462 = vld [vmem:[%s1 + $0x10] sm:$0xff]
  %v463 = vld [vmem:[%s1 + $0x18] sm:$0xff]
  %v464 = vld [vmem:[%s1 + $0x20] sm:$0xff]
  %v465 = vld [vmem:[%s1 + $0x28] sm:$0xff]
  %v466 = vld [vmem:[%s1 + $0x30] sm:$0xff]
  %v467 = vld [vmem:[%s1 + $0x38] sm:$0xff]
  %v468 = vld [vmem:[%s1 + $0x40] sm:$0xff]
  %v469 = vld [vmem:[%s1 + $0x48] sm:$0xff]
  %v470 = vld [vmem:[%s1 + $0x50] sm:$0xff]
  %v471 = vld [vmem:[%s1 + $0x58] sm:$0xff]
  %v472 = vld [vmem:[%s1 + $0x60] sm:$0xff]
  %v473 = vld [vmem:[%s1 + $0x68] sm:$0xff]
  %v474 = vld [vmem:[%s1 + $0x70] sm:$0xff]
  %v475 = vld [vmem:[%s1 + $0x78] sm:$0xff]
  %v476 = vld [vmem:[%s1 + $0x80] sm:$0xff]
  %v477 = vld [vmem:[%s1 + $0x88] sm:$0xff]
  %v478 = vld [vmem:[%s1 + $0x90] sm:$0xff]
  %v479 = vld [vmem:[%s1 + $0x98] sm:$0xff]
  %v480 = vld [vmem:[%s1 + $0xa0] sm:$0xff]
  %v481 = vld [vmem:[%s1 + $0xa8] sm:$0xff]
  %v482 = vld [vmem:[%s1 + $0xb0] sm:$0xff]
  %v483 = vld [vmem:[%s1 + $0xb8] sm:$0xff]
  %v484 = vld [vmem:[%s1 + $0xc0] sm:$0xff]
  %v485 = vld [vmem:[%s1 + $0xc8] sm:$0xff]
  %v486 = vld [vmem:[%s1 + $0xd0] sm:$0xff]
  %v487 = vld [vmem:[%s1 + $0xd8] sm:$0xff]
  %v488 = vld [vmem:[%s1 + $0xe0] sm:$0xff]
  %v489 = vld [vmem:[%s1 + $0xe8] sm:$0xff]
  %v490 = vld [vmem:[%s1 + $0xf0] sm:$0xff]
  %v491 = vld [vmem:[%s1 + $0xf8] sm:$0xff]
  %v492 = vld [vmem:[%s1 + $0x100] sm:$0xff]
  %v493 = vld [vmem:[%s1 + $0x108] sm:$0xff]
  %v494 = vld [vmem:[%s1 + $0x110] sm:$0xff]
  %v495 = vld [vmem:[%s1 + $0x118] sm:$0xff]
  %v496 = vld [vmem:[%s1 + $0x120] sm:$0xff]
  %v497 = vld [vmem:[%s1 + $0x128] sm:$0xff]
  %v498 = vld [vmem:[%s1 + $0x130] sm:$0xff]
  %v499 = vld [vmem:[%s1 + $0x138] sm:$0xff]
  %v500 = vld [vmem:[%s1 + $0x140] sm:$0xff]
  %v501 = vld [vmem:[%s1 + $0x148] sm:$0xff]
  %v502 = vld [vmem:[%s1 + $0x150] sm:$0xff]
  %v503 = vld [vmem:[%s1 + $0x158] sm:$0xff]
  %v504 = vld [vmem:[%s1 + $0x160] sm:$0xff]
  %v505 = vld [vmem:[%s1 + $0x168] sm:$0xff]
  %v506 = vld [vmem:[%s1 + $0x170] sm:$0xff]
  %v507 = vld [vmem:[%s1 + $0x178] sm:$0xff]
  %v508 = vld [vmem:[%s1 + $0x180] sm:$0xff]
  %v509 = vld [vmem:[%s1 + $0x188] sm:$0xff]
  %v510 = vld [vmem:[%s1 + $0x190] sm:$0xff]
  %v511 = vld [vmem:[%s1 + $0x198] sm:$0xff]
  %v512 = vld [vmem:[%s1 + $0x1a0] sm:$0xff]
  %v513 = vld [vmem:[%s1 + $0x1a8] sm:$0xff]
  %v514 = vand.u32 2147483647, %v460
  %v515 = vand.u32 2147483647, %v461
  %v516 = vand.u32 2147483647, %v462
  %v517 = vand.u32 2147483647, %v463
  %v518 = vand.u32 2147483647, %v464
  %v519 = vand.u32 2147483647, %v465
  %v520 = vand.u32 2147483647, %v466
  %v521 = vand.u32 2147483647, %v467
  %v522 = vand.u32 2147483647, %v468
  %v523 = vand.u32 2147483647, %v469
  %v524 = vand.u32 2147483647, %v470
  %v525 = vand.u32 2147483647, %v471
  %v526 = vand.u32 2147483647, %v472
  %v527 = vand.u32 2147483647, %v473
  %v528 = vand.u32 2147483647, %v474
  %v529 = vand.u32 2147483647, %v475
  %v530 = vand.u32 2147483647, %v476
  %v531 = vand.u32 2147483647, %v477
  %v532 = vand.u32 2147483647, %v478
  %v533 = vand.u32 2147483647, %v479
  %v534 = vand.u32 2147483647, %v480
  %v535 = vand.u32 2147483647, %v481
  %v536 = vand.u32 2147483647, %v482
  %v537 = vand.u32 2147483647, %v483
  %v538 = vand.u32 2147483647, %v484
  %v539 = vand.u32 2147483647, %v485
  %v540 = vand.u32 2147483647, %v486
  %v541 = vand.u32 2147483647, %v487
  %v542 = vand.u32 2147483647, %v488
  %v543 = vand.u32 2147483647, %v489
  %v544 = vand.u32 2147483647, %v490
  %v545 = vand.u32 2147483647, %v491
  %v546 = vand.u32 2147483647, %v492
  %v547 = vand.u32 2147483647, %v493
  %v548 = vand.u32 2147483647, %v494
  %v549 = vand.u32 2147483647, %v495
  %v550 = vand.u32 2147483647, %v496
  %v551 = vand.u32 2147483647, %v497
  %v552 = vand.u32 2147483647, %v498
  %v553 = vand.u32 2147483647, %v499
  %v554 = vand.u32 2147483647, %v500
  %v555 = vand.u32 2147483647, %v501
  %v556 = vand.u32 2147483647, %v502
  %v557 = vand.u32 2147483647, %v503
  %v558 = vand.u32 2147483647, %v504
  %v559 = vand.u32 2147483647, %v505
  %v560 = vand.u32 2147483647, %v506
  %v561 = vand.u32 2147483647, %v507
  %v562 = vand.u32 2147483647, %v508
  %v563 = vand.u32 2147483647, %v509
  %v564 = vand.u32 2147483647, %v510
  %v565 = vand.u32 2147483647, %v511
  %v566 = vand.u32 2147483647, %v512
  %v567 = vand.u32 2147483647, %v513
  %v568 = vld [vmem:[%s3] sm:$0xff]
  %vm569 = vcmask 64512
  %v570 = vsel %vm569, %v514, 0.0
  %v571 = vsel %vm569, %v515, 0.0
  %v572 = vadd.f32 %v570, %v571
  %v573 = vsel %vm569, %v516, 0.0
  %v574 = vadd.f32 %v572, %v573
  %v575 = vsel %vm569, %v517, 0.0
  %v576 = vadd.f32 %v574, %v575
  %v577 = vsel %vm569, %v518, 0.0
  %v578 = vadd.f32 %v576, %v577
  %v579 = vsel %vm569, %v519, 0.0
  %v580 = vadd.f32 %v578, %v579
  %v581 = vsel %vm569, %v520, 0.0
  %v582 = vadd.f32 %v580, %v581
  %v583 = vsel %vm569, %v521, 0.0
  %v584 = vadd.f32 %v582, %v583
  %v585 = vsel %vm569, %v522, 0.0
  %v586 = vadd.f32 %v584, %v585
  %v587 = vsel %vm569, %v523, 0.0
  %v588 = vadd.f32 %v586, %v587
  %v589 = vsel %vm569, %v524, 0.0
  %v590 = vadd.f32 %v588, %v589
  %v591 = vsel %vm569, %v525, 0.0
  %v592 = vadd.f32 %v590, %v591
  %v593 = vsel %vm569, %v526, 0.0
  %v594 = vadd.f32 %v592, %v593
  %v595 = vsel %vm569, %v527, 0.0
  %v596 = vadd.f32 %v594, %v595
  %v597 = vsel %vm569, %v528, 0.0
  %v598 = vadd.f32 %v596, %v597
  %v599 = vsel %vm569, %v529, 0.0
  %v600 = vadd.f32 %v598, %v599
  %v601 = vsel %vm569, %v530, 0.0
  %v602 = vadd.f32 %v600, %v601
  %v603 = vsel %vm569, %v531, 0.0
  %v604 = vadd.f32 %v602, %v603
  %v605 = vsel %vm569, %v532, 0.0
  %v606 = vadd.f32 %v604, %v605
  %v607 = vsel %vm569, %v533, 0.0
  %v608 = vadd.f32 %v606, %v607
  %v609 = vsel %vm569, %v534, 0.0
  %v610 = vadd.f32 %v608, %v609
  %v611 = vsel %vm569, %v535, 0.0
  %v612 = vadd.f32 %v610, %v611
  %v613 = vsel %vm569, %v536, 0.0
  %v614 = vadd.f32 %v612, %v613
  %v615 = vsel %vm569, %v537, 0.0
  %v616 = vadd.f32 %v614, %v615
  %v617 = vsel %vm569, %v538, 0.0
  %v618 = vadd.f32 %v616, %v617
  %v619 = vsel %vm569, %v539, 0.0
  %v620 = vadd.f32 %v618, %v619
  %v621 = vsel %vm569, %v540, 0.0
  %v622 = vadd.f32 %v620, %v621
  %v623 = vsel %vm569, %v541, 0.0
  %v624 = vadd.f32 %v622, %v623
  %v625 = vsel %vm569, %v542, 0.0
  %v626 = vadd.f32 %v624, %v625
  %v627 = vsel %vm569, %v543, 0.0
  %v628 = vadd.f32 %v626, %v627
  %v629 = vsel %vm569, %v544, 0.0
  %v630 = vadd.f32 %v628, %v629
  %v631 = vsel %vm569, %v545, 0.0
  %v632 = vadd.f32 %v630, %v631
  %v633 = vsel %vm569, %v546, 0.0
  %v634 = vadd.f32 %v632, %v633
  %v635 = vsel %vm569, %v547, 0.0
  %v636 = vadd.f32 %v634, %v635
  %v637 = vsel %vm569, %v548, 0.0
  %v638 = vadd.f32 %v636, %v637
  %v639 = vsel %vm569, %v549, 0.0
  %v640 = vadd.f32 %v638, %v639
  %v641 = vsel %vm569, %v550, 0.0
  %v642 = vadd.f32 %v640, %v641
  %v643 = vsel %vm569, %v551, 0.0
  %v644 = vadd.f32 %v642, %v643
  %v645 = vsel %vm569, %v552, 0.0
  %v646 = vadd.f32 %v644, %v645
  %v647 = vsel %vm569, %v553, 0.0
  %v648 = vadd.f32 %v646, %v647
  %v649 = vsel %vm569, %v554, 0.0
  %v650 = vadd.f32 %v648, %v649
  %v651 = vsel %vm569, %v555, 0.0
  %v652 = vadd.f32 %v650, %v651
  %v653 = vsel %vm569, %v556, 0.0
  %v654 = vadd.f32 %v652, %v653
  %v655 = vsel %vm569, %v557, 0.0
  %v656 = vadd.f32 %v654, %v655
  %v657 = vsel %vm569, %v558, 0.0
  %v658 = vadd.f32 %v656, %v657
  %v659 = vsel %vm569, %v559, 0.0
  %v660 = vadd.f32 %v658, %v659
  %v661 = vsel %vm569, %v560, 0.0
  %v662 = vadd.f32 %v660, %v661
  %v663 = vsel %vm569, %v561, 0.0
  %v664 = vadd.f32 %v662, %v663
  %v665 = vsel %vm569, %v562, 0.0
  %v666 = vadd.f32 %v664, %v665
  %v667 = vsel %vm569, %v563, 0.0
  %v668 = vadd.f32 %v666, %v667
  %v669 = vsel %vm569, %v564, 0.0
  %v670 = vadd.f32 %v668, %v669
  %v671 = vsel %vm569, %v565, 0.0
  %v672 = vadd.f32 %v670, %v671
  %v673 = vsel %vm569, %v566, 0.0
  %v674 = vadd.f32 %v672, %v673
  %v675 = vsel %vm569, %v567, 0.0
  %v676 = vadd.f32 %v674, %v675
  %677 = vadd.xlane.f32.xlu0 %v676
  %v678 = vpop.xlane.xlu0 %677
  %v679 = vrot.slane %v678, 4
  %v680 = vadd.f32 %v678, %v679
  %v681 = vrot.slane %v680, 2
  %v682 = vadd.f32 %v680, %v681
  %v683 = vrot.slane %v682, 1
  %v684 = vadd.f32 %v682, %v683
  %s685 = vtos %v684
  %v686 = vstv %s685
  %v687 = vadd.f32 %v568, %v686
  %688 = vst [vmem:[%s3] sm:$0xff] %v687
  %v689 = vld [vmem:[%s2] sm:$0xf]
  %v690 = vld [vmem:[%s2 + $0x4] sm:$0xf]
  %v691 = vld [vmem:[%s2 + $0x8] sm:$0xf]
  %v692 = vld [vmem:[%s2 + $0xc] sm:$0xf]
  %v693 = vld [vmem:[%s2 + $0x10] sm:$0xf]
  %v694 = vld [vmem:[%s2 + $0x14] sm:$0xf]
  %v695 = vld [vmem:[%s2 + $0x18] sm:$0xf]
  %v696 = vld [vmem:[%s2 + $0x1c] sm:$0xf]
  %v697 = vld [vmem:[%s2 + $0x20] sm:$0xf]
  %v698 = vld [vmem:[%s2 + $0x24] sm:$0xf]
  %v699 = vld [vmem:[%s2 + $0x28] sm:$0xf]
  %v700 = vld [vmem:[%s2 + $0x2c] sm:$0xf]
  %v701 = vld [vmem:[%s2 + $0x30] sm:$0xf]
  %v702 = vld [vmem:[%s2 + $0x34] sm:$0xf]
  %v703 = vld [vmem:[%s2 + $0x38] sm:$0xf]
  %v704 = vld [vmem:[%s2 + $0x3c] sm:$0xf]
  %v705 = vld [vmem:[%s2 + $0x40] sm:$0xf]
  %v706 = vld [vmem:[%s2 + $0x44] sm:$0xf]
  %v707 = vld [vmem:[%s2 + $0x48] sm:$0xf]
  %v708 = vld [vmem:[%s2 + $0x4c] sm:$0xf]
  %v709 = vld [vmem:[%s2 + $0x50] sm:$0xf]
  %v710 = vld [vmem:[%s2 + $0x54] sm:$0xf]
  %v711 = vld [vmem:[%s2 + $0x58] sm:$0xf]
  %v712 = vld [vmem:[%s2 + $0x5c] sm:$0xf]
  %v713 = vld [vmem:[%s2 + $0x60] sm:$0xf]
  %v714 = vld [vmem:[%s2 + $0x64] sm:$0xf]
  %v715 = vld [vmem:[%s2 + $0x68] sm:$0xf]
  %v716 = vld [vmem:[%s2 + $0x6c] sm:$0xf]
  %v717 = vld [vmem:[%s2 + $0x70] sm:$0xf]
  %v718 = vld [vmem:[%s2 + $0x74] sm:$0xf]
  %v719 = vld [vmem:[%s2 + $0x78] sm:$0xf]
  %v720 = vld [vmem:[%s2 + $0x7c] sm:$0xf]
  %v721 = vld [vmem:[%s2 + $0x80] sm:$0xf]
  %v722 = vld [vmem:[%s2 + $0x84] sm:$0xf]
  %v723 = vld [vmem:[%s2 + $0x88] sm:$0xf]
  %v724 = vld [vmem:[%s2 + $0x8c] sm:$0xf]
  %v725 = vld [vmem:[%s2 + $0x90] sm:$0xf]
  %v726 = vld [vmem:[%s2 + $0x94] sm:$0xf]
  %v727 = vld [vmem:[%s2 + $0x98] sm:$0xf]
  %v728 = vld [vmem:[%s2 + $0x9c] sm:$0xf]
  %v729 = vld [vmem:[%s2 + $0xa0] sm:$0xf]
  %v730 = vld [vmem:[%s2 + $0xa4] sm:$0xf]
  %v731 = vld [vmem:[%s2 + $0xa8] sm:$0xf]
  %v732 = vld [vmem:[%s2 + $0xac] sm:$0xf]
  %v733 = vld [vmem:[%s2 + $0xb0] sm:$0xf]
  %v734 = vld [vmem:[%s2 + $0xb4] sm:$0xf]
  %v735 = vld [vmem:[%s2 + $0xb8] sm:$0xf]
  %v736 = vld [vmem:[%s2 + $0xbc] sm:$0xf]
  %v737 = vld [vmem:[%s2 + $0xc0] sm:$0xf]
  %v738 = vld [vmem:[%s2 + $0xc4] sm:$0xf]
  %v739 = vld [vmem:[%s2 + $0xc8] sm:$0xf]
  %v740 = vld [vmem:[%s2 + $0xcc] sm:$0xf]
  %v741 = vld [vmem:[%s2 + $0xd0] sm:$0xf]
  %v742 = vld [vmem:[%s2 + $0xd4] sm:$0xf]
  %v743 = vand.u32 2147483647, %v689
  %v744 = vand.u32 2147483647, %v690
  %v745 = vand.u32 2147483647, %v691
  %v746 = vand.u32 2147483647, %v692
  %v747 = vand.u32 2147483647, %v693
  %v748 = vand.u32 2147483647, %v694
  %v749 = vand.u32 2147483647, %v695
  %v750 = vand.u32 2147483647, %v696
  %v751 = vand.u32 2147483647, %v697
  %v752 = vand.u32 2147483647, %v698
  %v753 = vand.u32 2147483647, %v699
  %v754 = vand.u32 2147483647, %v700
  %v755 = vand.u32 2147483647, %v701
  %v756 = vand.u32 2147483647, %v702
  %v757 = vand.u32 2147483647, %v703
  %v758 = vand.u32 2147483647, %v704
  %v759 = vand.u32 2147483647, %v705
  %v760 = vand.u32 2147483647, %v706
  %v761 = vand.u32 2147483647, %v707
  %v762 = vand.u32 2147483647, %v708
  %v763 = vand.u32 2147483647, %v709
  %v764 = vand.u32 2147483647, %v710
  %v765 = vand.u32 2147483647, %v711
  %v766 = vand.u32 2147483647, %v712
  %v767 = vand.u32 2147483647, %v713
  %v768 = vand.u32 2147483647, %v714
  %v769 = vand.u32 2147483647, %v715
  %v770 = vand.u32 2147483647, %v716
  %v771 = vand.u32 2147483647, %v717
  %v772 = vand.u32 2147483647, %v718
  %v773 = vand.u32 2147483647, %v719
  %v774 = vand.u32 2147483647, %v720
  %v775 = vand.u32 2147483647, %v721
  %v776 = vand.u32 2147483647, %v722
  %v777 = vand.u32 2147483647, %v723
  %v778 = vand.u32 2147483647, %v724
  %v779 = vand.u32 2147483647, %v725
  %v780 = vand.u32 2147483647, %v726
  %v781 = vand.u32 2147483647, %v727
  %v782 = vand.u32 2147483647, %v728
  %v783 = vand.u32 2147483647, %v729
  %v784 = vand.u32 2147483647, %v730
  %v785 = vand.u32 2147483647, %v731
  %v786 = vand.u32 2147483647, %v732
  %v787 = vand.u32 2147483647, %v733
  %v788 = vand.u32 2147483647, %v734
  %v789 = vand.u32 2147483647, %v735
  %v790 = vand.u32 2147483647, %v736
  %v791 = vand.u32 2147483647, %v737
  %v792 = vand.u32 2147483647, %v738
  %v793 = vand.u32 2147483647, %v739
  %v794 = vand.u32 2147483647, %v740
  %v795 = vand.u32 2147483647, %v741
  %v796 = vand.u32 2147483647, %v742
  %v797 = vld [vmem:[%s3] sm:$0xff]
  %vm798 = vcmask 27648
  %v799 = vsel %vm798, %v743, 0.0
  %v800 = vsel %vm798, %v744, 0.0
  %v801 = vadd.f32 %v799, %v800
  %v802 = vsel %vm798, %v745, 0.0
  %v803 = vadd.f32 %v801, %v802
  %v804 = vsel %vm798, %v746, 0.0
  %v805 = vadd.f32 %v803, %v804
  %v806 = vsel %vm798, %v747, 0.0
  %v807 = vadd.f32 %v805, %v806
  %v808 = vsel %vm798, %v748, 0.0
  %v809 = vadd.f32 %v807, %v808
  %v810 = vsel %vm798, %v749, 0.0
  %v811 = vadd.f32 %v809, %v810
  %v812 = vsel %vm798, %v750, 0.0
  %v813 = vadd.f32 %v811, %v812
  %v814 = vsel %vm798, %v751, 0.0
  %v815 = vadd.f32 %v813, %v814
  %v816 = vsel %vm798, %v752, 0.0
  %v817 = vadd.f32 %v815, %v816
  %v818 = vsel %vm798, %v753, 0.0
  %v819 = vadd.f32 %v817, %v818
  %v820 = vsel %vm798, %v754, 0.0
  %v821 = vadd.f32 %v819, %v820
  %v822 = vsel %vm798, %v755, 0.0
  %v823 = vadd.f32 %v821, %v822
  %v824 = vsel %vm798, %v756, 0.0
  %v825 = vadd.f32 %v823, %v824
  %v826 = vsel %vm798, %v757, 0.0
  %v827 = vadd.f32 %v825, %v826
  %v828 = vsel %vm798, %v758, 0.0
  %v829 = vadd.f32 %v827, %v828
  %v830 = vsel %vm798, %v759, 0.0
  %v831 = vadd.f32 %v829, %v830
  %v832 = vsel %vm798, %v760, 0.0
  %v833 = vadd.f32 %v831, %v832
  %v834 = vsel %vm798, %v761, 0.0
  %v835 = vadd.f32 %v833, %v834
  %v836 = vsel %vm798, %v762, 0.0
  %v837 = vadd.f32 %v835, %v836
  %v838 = vsel %vm798, %v763, 0.0
  %v839 = vadd.f32 %v837, %v838
  %v840 = vsel %vm798, %v764, 0.0
  %v841 = vadd.f32 %v839, %v840
  %v842 = vsel %vm798, %v765, 0.0
  %v843 = vadd.f32 %v841, %v842
  %v844 = vsel %vm798, %v766, 0.0
  %v845 = vadd.f32 %v843, %v844
  %v846 = vsel %vm798, %v767, 0.0
  %v847 = vadd.f32 %v845, %v846
  %v848 = vsel %vm798, %v768, 0.0
  %v849 = vadd.f32 %v847, %v848
  %v850 = vsel %vm798, %v769, 0.0
  %v851 = vadd.f32 %v849, %v850
  %v852 = vsel %vm798, %v770, 0.0
  %v853 = vadd.f32 %v851, %v852
  %v854 = vsel %vm798, %v771, 0.0
  %v855 = vadd.f32 %v853, %v854
  %v856 = vsel %vm798, %v772, 0.0
  %v857 = vadd.f32 %v855, %v856
  %v858 = vsel %vm798, %v773, 0.0
  %v859 = vadd.f32 %v857, %v858
  %v860 = vsel %vm798, %v774, 0.0
  %v861 = vadd.f32 %v859, %v860
  %v862 = vsel %vm798, %v775, 0.0
  %v863 = vadd.f32 %v861, %v862
  %v864 = vsel %vm798, %v776, 0.0
  %v865 = vadd.f32 %v863, %v864
  %v866 = vsel %vm798, %v777, 0.0
  %v867 = vadd.f32 %v865, %v866
  %v868 = vsel %vm798, %v778, 0.0
  %v869 = vadd.f32 %v867, %v868
  %v870 = vsel %vm798, %v779, 0.0
  %v871 = vadd.f32 %v869, %v870
  %v872 = vsel %vm798, %v780, 0.0
  %v873 = vadd.f32 %v871, %v872
  %v874 = vsel %vm798, %v781, 0.0
  %v875 = vadd.f32 %v873, %v874
  %v876 = vsel %vm798, %v782, 0.0
  %v877 = vadd.f32 %v875, %v876
  %v878 = vsel %vm798, %v783, 0.0
  %v879 = vadd.f32 %v877, %v878
  %v880 = vsel %vm798, %v784, 0.0
  %v881 = vadd.f32 %v879, %v880
  %v882 = vsel %vm798, %v785, 0.0
  %v883 = vadd.f32 %v881, %v882
  %v884 = vsel %vm798, %v786, 0.0
  %v885 = vadd.f32 %v883, %v884
  %v886 = vsel %vm798, %v787, 0.0
  %v887 = vadd.f32 %v885, %v886
  %v888 = vsel %vm798, %v788, 0.0
  %v889 = vadd.f32 %v887, %v888
  %v890 = vsel %vm798, %v789, 0.0
  %v891 = vadd.f32 %v889, %v890
  %v892 = vsel %vm798, %v790, 0.0
  %v893 = vadd.f32 %v891, %v892
  %v894 = vsel %vm798, %v791, 0.0
  %v895 = vadd.f32 %v893, %v894
  %v896 = vsel %vm798, %v792, 0.0
  %v897 = vadd.f32 %v895, %v896
  %v898 = vsel %vm798, %v793, 0.0
  %v899 = vadd.f32 %v897, %v898
  %v900 = vsel %vm798, %v794, 0.0
  %v901 = vadd.f32 %v899, %v900
  %v902 = vsel %vm798, %v795, 0.0
  %v903 = vadd.f32 %v901, %v902
  %v904 = vsel %vm798, %v796, 0.0
  %v905 = vadd.f32 %v903, %v904
  %906 = vadd.xlane.f32.xlu0 %v905
  %v907 = vpop.xlane.xlu0 %906
  %v908 = vrot.slane %v907, 4
  %v909 = vadd.f32 %v907, %v908
  %v910 = vrot.slane %v909, 2
  %v911 = vadd.f32 %v909, %v910
  %v912 = vrot.slane %v911, 1
  %v913 = vadd.f32 %v911, %v912
  %s914 = vtos %v913
  %v915 = vstv %s914
  %v916 = vadd.f32 %v797, %v915
  %917 = vst [vmem:[%s3] sm:$0xff] %v916
  // Predicated region
  $region14: #{_detector_loss.1} parent=0 // pred_check
    _
  $region15: #{_detector_loss.1} parent=0 // pred_check_branch
    %919 = sbr.rel (0) target = $region17
  $region16: #{_detector_loss.1} parent=0 // pred_region
    _
  $region17: #{_detector_loss.1} parent=0 // pred_fallthru
    _
  // Predicated region
  $region18: #{_detector_loss.1} parent=0 // pred_check
    _
  $region19: #{_detector_loss.1} parent=0 // pred_check_branch
    %921 = sbr.rel (0) target = $region21
  $region20: #{_detector_loss.1} parent=0 // pred_region
    _
  $region21: #{_detector_loss.1} parent=0 // pred_fallthru
    _

</llo_original>
